<compile_context>
chip_gen: v6e
topology: v6e:2x2x1
jax: 0.10.0
libtpu: 0.0.40
codegen_flags: <defaults>
</compile_context>

<pallas_src>
import functools

import jax
import jax.numpy as jnp
from jax.experimental import pallas as pl
from jax.experimental.pallas import tpu as pltpu


def _mlp_kernel(x_ref, w1_ref, b1_ref, w2_ref, b2_ref, w3_ref, b3_ref, o_ref):
    x = x_ref[...]
    w1 = w1_ref[...]
    in_dim = x.shape[1]
    hp = jax.lax.Precision.HIGHEST

    # ---- Layer 1: Linear(input_dim -> hidden) + ReLU -----------------------
    # K = input_dim is tiny (4): do it as `in_dim` broadcast-multiply-adds on
    # the VPU (exact f32) instead of a degenerate MXU pass.  Fall back to the
    # MXU for larger K.
    if in_dim <= 16:
        h1 = b1_ref[...] + x[:, 0:1] * w1[0:1, :]          # bias folded into MAC 0
        for k in range(1, in_dim):                          # static unroll
            h1 = h1 + x[:, k:k + 1] * w1[k:k + 1, :]
    else:
        h1 = jnp.dot(x, w1, preferred_element_type=jnp.float32,
                     precision=hp) + b1_ref[...]
    h1 = jnp.maximum(h1, 0.0)

    # ---- Layer 2: Linear(hidden -> hidden) + ReLU --------------------------
    # 64x64 contraction: the one matmul here that actually belongs on the MXU.
    h2 = jnp.dot(h1, w2_ref[...], preferred_element_type=jnp.float32,
                 precision=hp) + b2_ref[...]
    h2 = jnp.maximum(h2, 0.0)

    # ---- Layer 3: Linear(hidden -> output_dim), no activation --------------
    # N = out_dim = 2 fits in a single MXU pass and depends on layer 2 anyway.
    out = jnp.dot(h2, w3_ref[...], preferred_element_type=jnp.float32,
                  precision=hp) + b3_ref[...]
    o_ref[...] = out.astype(o_ref.dtype)


def _round_up(n, m):
    return ((n + m - 1) // m) * m


@functools.partial(jax.jit, static_argnames=("max_batch_tile",))
def bc_policy_forward(x, params, *, max_batch_tile=1024):
    """BCPolicy MLP forward pass with a fused Pallas TPU kernel.

    x: [B, input_dim] float32
    params: dict with w1 [in,h], b1 [1,h], w2 [h,h], b2 [1,h], w3 [h,out], b3 [1,out]
    """
    w1, b1 = params["w1"], params["b1"]
    w2, b2 = params["w2"], params["b2"]
    w3, b3 = params["w3"], params["b3"]

    B, in_dim = x.shape
    hid = w1.shape[1]
    out_dim = w3.shape[1]

    # Tile choice:
    #   * B <= max_batch_tile : one grid step covering the whole (padded) batch.
    #   * otherwise           : max_batch_tile-row tiles -> grid length >= 2 on
    #                           a "parallel" axis (lets v7x use both TCs).
    # VMEM per tile at 1024 rows: x 16 KiB + hidden acts 2x256 KiB + out 8 KiB
    # + weights ~17 KiB -- far under the scoped-VMEM default on all chips.
    max_batch_tile = _round_up(max_batch_tile, 8)           # f32 sublane multiple
    batch_tile = min(_round_up(B, 8), max_batch_tile)
    grid_len = pl.cdiv(B, batch_tile)
    b_pad = grid_len * batch_tile
    if b_pad != B:
        x = jnp.pad(x, ((0, b_pad - B), (0, 0)))            # pad rows, sliced off below

    out = pl.pallas_call(
        _mlp_kernel,
        out_shape=jax.ShapeDtypeStruct((b_pad, out_dim), jnp.float32),
        grid_spec=pltpu.PrefetchScalarGridSpec(
            num_scalar_prefetch=0,
            grid=(grid_len,),
            in_specs=[
                pl.BlockSpec((batch_tile, in_dim), lambda i: (i, 0)),  # x tile
                pl.BlockSpec((in_dim, hid), lambda i: (0, 0)),         # w1 (resident)
                pl.BlockSpec((1, hid), lambda i: (0, 0)),              # b1
                pl.BlockSpec((hid, hid), lambda i: (0, 0)),            # w2
                pl.BlockSpec((1, hid), lambda i: (0, 0)),              # b2
                pl.BlockSpec((hid, out_dim), lambda i: (0, 0)),        # w3
                pl.BlockSpec((1, out_dim), lambda i: (0, 0)),          # b3
            ],
            out_specs=pl.BlockSpec((batch_tile, out_dim), lambda i: (i, 0)),
        ),
        compiler_params=pltpu.CompilerParams(
            dimension_semantics=("parallel",),   # batch axis -> megacore-shardable
        ),
    )(x, w1, b1, w2, b2, w3, b3)

    return out if b_pad == B else out[:B]


def init_params(key, input_dim=4, hidden_dim=64, output_dim=2):
    """Deterministic synthetic init (Kaiming-uniform-like bounds, as nn.Linear)."""
    ks = jax.random.split(key, 6)

    def linear(kw, kb, fan_in, fan_out):
        bound = 1.0 / jnp.sqrt(fan_in)
        w = jax.random.uniform(kw, (fan_in, fan_out), jnp.float32, -bound, bound)
        b = jax.random.uniform(kb, (1, fan_out), jnp.float32, -bound, bound)
        return w, b

    w1, b1 = linear(ks[0], ks[1], input_dim, hidden_dim)
    w2, b2 = linear(ks[2], ks[3], hidden_dim, hidden_dim)
    w3, b3 = linear(ks[4], ks[5], hidden_dim, output_dim)
    return {"w1": w1, "b1": b1, "w2": w2, "b2": b2, "w3": w3, "b3": b3}


def _reference_forward(x, p):
    hp = jax.lax.Precision.HIGHEST
    h1 = jnp.maximum(jnp.dot(x, p["w1"], precision=hp) + p["b1"], 0.0)
    h2 = jnp.maximum(jnp.dot(h1, p["w2"], precision=hp) + p["b2"], 0.0)
    return jnp.dot(h2, p["w3"], precision=hp) + p["b3"]


if __name__ == "__main__":
    key = jax.random.PRNGKey(0)
    k_param, k_x1, k_x2 = jax.random.split(key, 3)

    input_dim, hidden_dim, output_dim = 4, 64, 2
    params = init_params(k_param, input_dim, hidden_dim, output_dim)

    # Small batch (the module's typical use): single-step kernel, grid=(1,).
    x_small = jax.random.normal(k_x1, (8, input_dim), jnp.float32)
    out_small = jax.block_until_ready(bc_policy_forward(x_small, params))
    ref_small = _reference_forward(x_small, params)
    assert out_small.shape == (8, output_dim)
    assert jnp.allclose(out_small, ref_small, atol=1e-4, rtol=1e-4)

    # Ragged batch: exercises cdiv grid, zero-padding and a multi-step parallel grid.
    x_big = jax.random.normal(k_x2, (600, input_dim), jnp.float32)
    out_big = jax.block_until_ready(
        bc_policy_forward(x_big, params, max_batch_tile=256))  # grid=(3,), pad to 768
    ref_big = _reference_forward(x_big, params)
    assert out_big.shape == (600, output_dim)
    assert jnp.allclose(out_big, ref_big, atol=1e-4, rtol=1e-4)

    print("KERNEL_OK")
</pallas_src>

<mosaic_0001>
module attributes {stable_mosaic.version = 11 : i64} {
  func.func @_mlp_kernel(%arg0: i32, %arg1: memref<8x4xf32, #tpu.memory_space<vmem>>, %arg2: memref<4x64xf32, #tpu.memory_space<vmem>>, %arg3: memref<1x64xf32, #tpu.memory_space<vmem>>, %arg4: memref<64x64xf32, #tpu.memory_space<vmem>>, %arg5: memref<1x64xf32, #tpu.memory_space<vmem>>, %arg6: memref<64x2xf32, #tpu.memory_space<vmem>>, %arg7: memref<1x2xf32, #tpu.memory_space<vmem>>, %arg8: memref<8x2xf32, #tpu.memory_space<vmem>>) attributes {dimension_semantics = [#tpu.dimension_semantics<parallel>], iteration_bounds = array<i64: 1>, scalar_prefetch = 0 : i64, scratch_operands = 0 : i64, tpu.core_type = #tpu.core_type<tc>, window_params = [{transform_indices = @transform_0, window_bounds = array<i64: 8, 4>}, {pipeline_mode = #tpu.pipeline_mode<synchronous>, transform_indices = @transform_1, window_bounds = array<i64: 4, 64>}, {pipeline_mode = #tpu.pipeline_mode<synchronous>, transform_indices = @transform_2, window_bounds = array<i64: 1, 64>}, {pipeline_mode = #tpu.pipeline_mode<synchronous>, transform_indices = @transform_3, window_bounds = array<i64: 64, 64>}, {pipeline_mode = #tpu.pipeline_mode<synchronous>, transform_indices = @transform_4, window_bounds = array<i64: 1, 64>}, {pipeline_mode = #tpu.pipeline_mode<synchronous>, transform_indices = @transform_5, window_bounds = array<i64: 64, 2>}, {pipeline_mode = #tpu.pipeline_mode<synchronous>, transform_indices = @transform_6, window_bounds = array<i64: 1, 2>}, {transform_indices = @transform_7, window_bounds = array<i64: 8, 2>}]} {
    %c0 = arith.constant 0 : index
    %c0_0 = arith.constant 0 : index
    %0 = vector.load %arg1[%c0, %c0_0] : memref<8x4xf32, #tpu.memory_space<vmem>>, vector<8x4xf32>
    %c0_1 = arith.constant 0 : index
    %c0_2 = arith.constant 0 : index
    %1 = vector.load %arg2[%c0_1, %c0_2] : memref<4x64xf32, #tpu.memory_space<vmem>>, vector<4x64xf32>
    %c0_3 = arith.constant 0 : index
    %c0_4 = arith.constant 0 : index
    %2 = vector.load %arg3[%c0_3, %c0_4] : memref<1x64xf32, #tpu.memory_space<vmem>>, vector<1x64xf32>
    %3 = vector.extract_strided_slice %0 {offsets = [0, 0], sizes = [8, 1], strides = [1, 1]} : vector<8x4xf32> to vector<8x1xf32>
    %4 = vector.extract_strided_slice %1 {offsets = [0, 0], sizes = [1, 64], strides = [1, 1]} : vector<4x64xf32> to vector<1x64xf32>
    %5 = vector.broadcast %3 : vector<8x1xf32> to vector<8x64xf32>
    %6 = vector.broadcast %4 : vector<1x64xf32> to vector<8x64xf32>
    %7 = arith.mulf %5, %6 : vector<8x64xf32>
    %8 = vector.broadcast %2 : vector<1x64xf32> to vector<8x64xf32>
    %9 = arith.addf %8, %7 : vector<8x64xf32>
    %10 = vector.extract_strided_slice %0 {offsets = [0, 1], sizes = [8, 1], strides = [1, 1]} : vector<8x4xf32> to vector<8x1xf32>
    %11 = vector.extract_strided_slice %1 {offsets = [1, 0], sizes = [1, 64], strides = [1, 1]} : vector<4x64xf32> to vector<1x64xf32>
    %12 = vector.broadcast %10 : vector<8x1xf32> to vector<8x64xf32>
    %13 = vector.broadcast %11 : vector<1x64xf32> to vector<8x64xf32>
    %14 = arith.mulf %12, %13 : vector<8x64xf32>
    %15 = arith.addf %9, %14 : vector<8x64xf32>
    %16 = vector.extract_strided_slice %0 {offsets = [0, 2], sizes = [8, 1], strides = [1, 1]} : vector<8x4xf32> to vector<8x1xf32>
    %17 = vector.extract_strided_slice %1 {offsets = [2, 0], sizes = [1, 64], strides = [1, 1]} : vector<4x64xf32> to vector<1x64xf32>
    %18 = vector.broadcast %16 : vector<8x1xf32> to vector<8x64xf32>
    %19 = vector.broadcast %17 : vector<1x64xf32> to vector<8x64xf32>
    %20 = arith.mulf %18, %19 : vector<8x64xf32>
    %21 = arith.addf %15, %20 : vector<8x64xf32>
    %22 = vector.extract_strided_slice %0 {offsets = [0, 3], sizes = [8, 1], strides = [1, 1]} : vector<8x4xf32> to vector<8x1xf32>
    %23 = vector.extract_strided_slice %1 {offsets = [3, 0], sizes = [1, 64], strides = [1, 1]} : vector<4x64xf32> to vector<1x64xf32>
    %24 = vector.broadcast %22 : vector<8x1xf32> to vector<8x64xf32>
    %25 = vector.broadcast %23 : vector<1x64xf32> to vector<8x64xf32>
    %26 = arith.mulf %24, %25 : vector<8x64xf32>
    %27 = arith.addf %21, %26 : vector<8x64xf32>
    %cst = arith.constant 0.000000e+00 : f32
    %28 = vector.broadcast %cst : f32 to vector<8x64xf32>
    %29 = arith.maximumf %27, %28 : vector<8x64xf32>
    %c0_5 = arith.constant 0 : index
    %c0_6 = arith.constant 0 : index
    %30 = vector.load %arg4[%c0_5, %c0_6] : memref<64x64xf32, #tpu.memory_space<vmem>>, vector<64x64xf32>
    %cst_7 = arith.constant dense<0.000000e+00> : vector<8x64xf32>
    %31 = tpu.matmul %29, %30, %cst_7 {dimension_numbers = #tpu.dot_dimension_numbers<[1], [0], [0], [1], [0, 0, 1, 1], [], []>, precision = #tpu.contract_precision<fp32>} : vector<8x64xf32>, vector<64x64xf32>, vector<8x64xf32> -> vector<8x64xf32>
    %c0_8 = arith.constant 0 : index
    %c0_9 = arith.constant 0 : index
    %32 = vector.load %arg5[%c0_8, %c0_9] : memref<1x64xf32, #tpu.memory_space<vmem>>, vector<1x64xf32>
    %33 = vector.broadcast %32 : vector<1x64xf32> to vector<8x64xf32>
    %34 = arith.addf %31, %33 : vector<8x64xf32>
    %cst_10 = arith.constant 0.000000e+00 : f32
    %35 = vector.broadcast %cst_10 : f32 to vector<8x64xf32>
    %36 = arith.maximumf %34, %35 : vector<8x64xf32>
    %c0_11 = arith.constant 0 : index
    %c0_12 = arith.constant 0 : index
    %37 = vector.load %arg6[%c0_11, %c0_12] : memref<64x2xf32, #tpu.memory_space<vmem>>, vector<64x2xf32>
    %cst_13 = arith.constant dense<0.000000e+00> : vector<8x2xf32>
    %38 = tpu.matmul %36, %37, %cst_13 {dimension_numbers = #tpu.dot_dimension_numbers<[1], [0], [0], [1], [0, 0, 1, 1], [], []>, precision = #tpu.contract_precision<fp32>} : vector<8x64xf32>, vector<64x2xf32>, vector<8x2xf32> -> vector<8x2xf32>
    %c0_14 = arith.constant 0 : index
    %c0_15 = arith.constant 0 : index
    %39 = vector.load %arg7[%c0_14, %c0_15] : memref<1x2xf32, #tpu.memory_space<vmem>>, vector<1x2xf32>
    %40 = vector.broadcast %39 : vector<1x2xf32> to vector<8x2xf32>
    %41 = arith.addf %38, %40 : vector<8x2xf32>
    %c0_16 = arith.constant 0 : index
    %c0_17 = arith.constant 0 : index
    %42 = vector.load %arg8[%c0_16, %c0_17] : memref<8x2xf32, #tpu.memory_space<vmem>>, vector<8x2xf32>
    tpu.vector_store %arg8[%c0_16, %c0_17], %41 {strides = array<i32>} : memref<8x2xf32, #tpu.memory_space<vmem>>, vector<8x2xf32>,
    return
  }
  func.func @transform_0(%arg0: i32) -> (i32, i32) {
    %c0_i32 = arith.constant 0 : i32
    %c0_i32_0 = arith.constant 0 : i32
    return %arg0, %c0_i32 : i32, i32
  }
  func.func @transform_1(%arg0: i32) -> (i32, i32) {
    %c0_i32 = arith.constant 0 : i32
    %c0_i32_0 = arith.constant 0 : i32
    %c0_i32_1 = arith.constant 0 : i32
    return %c0_i32, %c0_i32_0 : i32, i32
  }
  func.func @transform_2(%arg0: i32) -> (i32, i32) {
    %c0_i32 = arith.constant 0 : i32
    %c0_i32_0 = arith.constant 0 : i32
    %c0_i32_1 = arith.constant 0 : i32
    return %c0_i32, %c0_i32_0 : i32, i32
  }
  func.func @transform_3(%arg0: i32) -> (i32, i32) {
    %c0_i32 = arith.constant 0 : i32
    %c0_i32_0 = arith.constant 0 : i32
    %c0_i32_1 = arith.constant 0 : i32
    return %c0_i32, %c0_i32_0 : i32, i32
  }
  func.func @transform_4(%arg0: i32) -> (i32, i32) {
    %c0_i32 = arith.constant 0 : i32
    %c0_i32_0 = arith.constant 0 : i32
    %c0_i32_1 = arith.constant 0 : i32
    return %c0_i32, %c0_i32_0 : i32, i32
  }
  func.func @transform_5(%arg0: i32) -> (i32, i32) {
    %c0_i32 = arith.constant 0 : i32
    %c0_i32_0 = arith.constant 0 : i32
    %c0_i32_1 = arith.constant 0 : i32
    return %c0_i32, %c0_i32_0 : i32, i32
  }
  func.func @transform_6(%arg0: i32) -> (i32, i32) {
    %c0_i32 = arith.constant 0 : i32
    %c0_i32_0 = arith.constant 0 : i32
    %c0_i32_1 = arith.constant 0 : i32
    return %c0_i32, %c0_i32_0 : i32, i32
  }
  func.func @transform_7(%arg0: i32) -> (i32, i32) {
    %c0_i32 = arith.constant 0 : i32
    %c0_i32_0 = arith.constant 0 : i32
    return %arg0, %c0_i32 : i32, i32
  }
}

</mosaic_0001>

<llo_original>
// kernel: bc_policy_forward.1
$region0: #{bc_policy_forward.1}
  #allocation0 [shape = 'u32[]', space=smem, size = 0x4, offset = 0x4, fixed_abs, tag = 'smem constant byte address 0x4 - core index']
  #allocation1 [shape = 'u32[144,128]{1,0:T(1,128)}', space=vmem, size = 0x12000, scoped, tag = 'internal scratch']
  %s0 = inlined_call_operand.vmem [shape: f32[8,4], index: 0, kind: input, shape index: {}]
  %s1 = inlined_call_operand.vmem [shape: f32[4,64], index: 1, kind: input, shape index: {}]
  %s2 = inlined_call_operand.vmem [shape: f32[1,64], index: 2, kind: input, shape index: {}]
  %s3 = inlined_call_operand.vmem [shape: f32[64,64], index: 3, kind: input, shape index: {}]
  %s4 = inlined_call_operand.vmem [shape: f32[1,64], index: 4, kind: input, shape index: {}]
  %s5 = inlined_call_operand.vmem [shape: f32[64,2], index: 5, kind: input, shape index: {}]
  %s6 = inlined_call_operand.vmem [shape: f32[1,2], index: 6, kind: input, shape index: {}]
  %s7 = inlined_call_operand.vmem [shape: f32[8,2], index: 7, kind: output, shape index: {}]
  %s8 = sld [smem:[#allocation0]]
  $region38: #{bc_policy_forward.1} parent=0
    _
  %s10 = ssub.s32 1, %s8
  %s11 = scalar_select 0, %s10, %s8
  // Predicated region
  $region2: #{bc_policy_forward.1} parent=0 // pred_check
    _
  $region3: #{bc_policy_forward.1} parent=0 // pred_check_branch
    %13 = sbr.rel (0) target = $region5
  $region4: #{bc_policy_forward.1} parent=0 // pred_region
    _
  $region5: #{bc_policy_forward.1} parent=0 // pred_fallthru
    _
  // Predicated region
  $region6: #{bc_policy_forward.1} parent=0 // pred_check
    _
  $region7: #{bc_policy_forward.1} parent=0 // pred_check_branch
    %15 = sbr.rel (0) target = $region9
  $region8: #{bc_policy_forward.1} parent=0 // pred_region
    _
  $region9: #{bc_policy_forward.1} parent=0 // pred_fallthru
    _
  // Predicated region
  $region10: #{bc_policy_forward.1} parent=0 // pred_check
    _
  $region11: #{bc_policy_forward.1} parent=0 // pred_check_branch
    %17 = sbr.rel (0) target = $region13
  $region12: #{bc_policy_forward.1} parent=0 // pred_region
    _
  $region13: #{bc_policy_forward.1} parent=0 // pred_fallthru
    _
  // Predicated region
  $region14: #{bc_policy_forward.1} parent=0 // pred_check
    _
  $region15: #{bc_policy_forward.1} parent=0 // pred_check_branch
    %19 = sbr.rel (0) target = $region17
  $region16: #{bc_policy_forward.1} parent=0 // pred_region
    _
  $region17: #{bc_policy_forward.1} parent=0 // pred_fallthru
    _
  // Predicated region
  $region18: #{bc_policy_forward.1} parent=0 // pred_check
    _
  $region19: #{bc_policy_forward.1} parent=0 // pred_check_branch
    %21 = sbr.rel (0) target = $region21
  $region20: #{bc_policy_forward.1} parent=0 // pred_region
    _
  $region21: #{bc_policy_forward.1} parent=0 // pred_fallthru
    _
  // Predicated region
  $region22: #{bc_policy_forward.1} parent=0 // pred_check
    _
  $region23: #{bc_policy_forward.1} parent=0 // pred_check_branch
    %23 = sbr.rel (0) target = $region25
  $region24: #{bc_policy_forward.1} parent=0 // pred_region
    _
  $region25: #{bc_policy_forward.1} parent=0 // pred_fallthru
    _
  // Predicated region
  $region26: #{bc_policy_forward.1} parent=0 // pred_check
    _
  $region27: #{bc_policy_forward.1} parent=0 // pred_check_branch
    %25 = sbr.rel (0) target = $region29
  $region28: #{bc_policy_forward.1} parent=0 // pred_region
    _
  $region29: #{bc_policy_forward.1} parent=0 // pred_fallthru
    _
  %v26 = vld [vmem:[%s0] sm:$0xff]
  %v27 = vld [vmem:[%s1] sm:$0xf]
  %v28 = vld [vmem:[%s2] sm:$0x1]
  %30 = vset.pattern.permute.xlu0 0
  %31 = vperm.xlu0 %30, %v26
  %v32 = vpop.permute.xlu0 %31
  %v34 = vlaneseq
  %v35 = vshrl.u32 %v34, 7
  %v36 = vsub.s32 0, %v35
  %v37 = vrot.slane %v27, %v36
  %v38 = vmul.f32 %v32, %v37
  %v40 = vlaneseq
  %v41 = vshrl.u32 %v40, 7
  %v42 = vsub.s32 0, %v41
  %v43 = vrot.slane %v28, %v42
  %v45 = vadd.f32 %v43, %v38
  %46 = vset.pattern.permute.xlu0 1
  %47 = vperm.xlu0 %46, %v26
  %v48 = vpop.permute.xlu0 %47
  %v50 = vlaneseq
  %v51 = vshrl.u32 %v50, 7
  %v52 = vsub.s32 1, %v51
  %v53 = vrot.slane %v27, %v52
  %v54 = vmul.f32 %v48, %v53
  %v55 = vadd.f32 %v45, %v54
  %56 = vset.pattern.permute.xlu0 2
  %57 = vperm.xlu0 %56, %v26
  %v58 = vpop.permute.xlu0 %57
  %v60 = vlaneseq
  %v61 = vshrl.u32 %v60, 7
  %v62 = vsub.s32 2, %v61
  %v63 = vrot.slane %v27, %v62
  %v64 = vmul.f32 %v58, %v63
  %v65 = vadd.f32 %v55, %v64
  %66 = vset.pattern.permute.xlu0 3
  %67 = vperm.xlu0 %66, %v26
  %v68 = vpop.permute.xlu0 %67
  %v70 = vlaneseq
  %v71 = vshrl.u32 %v70, 7
  %v72 = vsub.s32 3, %v71
  %v73 = vrot.slane %v27, %v72
  %v74 = vmul.f32 %v68, %v73
  %v75 = vadd.f32 %v65, %v74
  %v76 = vmax.f32 %v75, 0.0
  %v77 = vld [vmem:[%s3] sm:$0xff]
  %v78 = vld [vmem:[%s3 + $0x8] sm:$0xff]
  %v79 = vld [vmem:[%s3 + $0x10] sm:$0xff]
  %v80 = vld [vmem:[%s3 + $0x18] sm:$0xff]
  %v81 = vld [vmem:[%s3 + $0x20] sm:$0xff]
  %v82 = vld [vmem:[%s3 + $0x28] sm:$0xff]
  %v83 = vld [vmem:[%s3 + $0x30] sm:$0xff]
  %v84 = vld [vmem:[%s3 + $0x38] sm:$0xff]
  %v85 = vld [vmem:[%s4] sm:$0x1]
  %v87 = vlaneseq
  %v88 = vshrl.u32 %v87, 7
  %v89 = vsub.s32 0, %v88
  %v90 = vrot.slane %v85, %v89
  %vm92 = vcmask 523264
  %v94 = vsel %vm92, %v76, 0
  %96 = vmatprep.subr.mxu0 0.0
  %97 = vmatpush1.msra.mxu0 0.0
  %98 = vmatprep.subr.mxu0 0.0
  %99 = vmatpush1.msra.mxu0 0.0
  %100 = vmatprep.subr.mxu0 0.0
  %101 = vmatpush1.msra.mxu0 0.0
  %102 = vmatprep.subr.mxu0 0.0
  %103 = vmatpush1.msra.mxu0 0.0
  %104 = vmatprep.subr.mxu0 0.0
  %105 = vmatpush1.msra.mxu0 0.0
  %106 = vmatprep.subr.mxu0 0.0
  %107 = vmatpush1.msra.mxu0 0.0
  %108 = vmatprep.subr.mxu0 0.0
  %109 = vmatpush1.msra.mxu0 0.0
  %110 = vmatprep.subr.mxu0 0.0
  %111 = vmatpush1.msra.mxu0 0.0
  %112 = vmatprep.subr.mxu0 0.0
  %v113 = vand.u32 %v84, 4294901760
  %114 = vmatpush1.msra.mxu0 %v113
  %115 = vmatprep.subr.mxu0 0.0
  %v116 = vand.u32 %v83, 4294901760
  %117 = vmatpush1.msra.mxu0 %v116
  %118 = vmatprep.subr.mxu0 0.0
  %v119 = vand.u32 %v82, 4294901760
  %120 = vmatpush1.msra.mxu0 %v119
  %121 = vmatprep.subr.mxu0 0.0
  %v122 = vand.u32 %v81, 4294901760
  %123 = vmatpush1.msra.mxu0 %v122
  %124 = vmatprep.subr.mxu0 0.0
  %v125 = vand.u32 %v80, 4294901760
  %126 = vmatpush1.msra.mxu0 %v125
  %127 = vmatprep.subr.mxu0 0.0
  %v128 = vand.u32 %v79, 4294901760
  %129 = vmatpush1.msra.mxu0 %v128
  %130 = vmatprep.subr.mxu0 0.0
  %v131 = vand.u32 %v78, 4294901760
  %132 = vmatpush1.msra.mxu0 %v131
  %133 = vmatprep.subr.mxu0 0.0
  %v134 = vand.u32 %v77, 4294901760
  %135 = vmatpush1.msra.mxu0 %v134
  %136 = vmatprep.subr.mxu0 0.0
  %137 = vmatpush2.msra.mxu0 0.0
  %138 = vmatprep.subr.mxu0 0.0
  %139 = vmatpush2.msra.mxu0 0.0
  %140 = vmatprep.subr.mxu0 0.0
  %141 = vmatpush2.msra.mxu0 0.0
  %142 = vmatprep.subr.mxu0 0.0
  %143 = vmatpush2.msra.mxu0 0.0
  %144 = vmatprep.subr.mxu0 0.0
  %145 = vmatpush2.msra.mxu0 0.0
  %146 = vmatprep.subr.mxu0 0.0
  %147 = vmatpush2.msra.mxu0 0.0
  %148 = vmatprep.subr.mxu0 0.0
  %149 = vmatpush2.msra.mxu0 0.0
  %150 = vmatprep.subr.mxu0 0.0
  %151 = vmatpush2.msra.mxu0 0.0
  %152 = vmatprep.subr.mxu0 0.0
  %153 = vmatpush2.msra.mxu0 0.0
  %154 = vmatprep.subr.mxu0 0.0
  %155 = vmatpush2.msra.mxu0 0.0
  %156 = vmatprep.subr.mxu0 0.0
  %157 = vmatpush2.msra.mxu0 0.0
  %158 = vmatprep.subr.mxu0 0.0
  %159 = vmatpush2.msra.mxu0 0.0
  %160 = vmatprep.subr.mxu0 0.0
  %161 = vmatpush2.msra.mxu0 0.0
  %162 = vmatprep.subr.mxu0 0.0
  %163 = vmatpush2.msra.mxu0 0.0
  %164 = vmatprep.subr.mxu0 0.0
  %165 = vmatpush2.msra.mxu0 0.0
  %166 = vmatprep.subr.mxu0 0.0
  %167 = vmatpush2.msra.mxu0 0.0
  %168 = vmatprep.mubr.f32.mxu0 0.0
  %v169 = vand.u32 %v94, 4294901760
  %v170 = vsub.f32 %v94, %v169
  %v171 = vand.u32 %v170, 4294901760
  %v172 = vsub.f32 %v170, %v171
  %v173 = vand.u32 %v172, 4294901760
  %174 = vmatmul.mubr.f32.gmra.mxu0 %v173
  %v175 = vpop.f32.mrf.mxu0
  %v176 = vadd.f32 %v90, %v175
  %v177 = vpop.f32.mrf.mxu0
  %178 = vdwg.mxu0
  %179 = vmatprep.subr.mxu0 0.0
  %180 = vmatpush1.msra.mxu0 0.0
  %181 = vmatprep.subr.mxu0 0.0
  %182 = vmatpush1.msra.mxu0 0.0
  %183 = vmatprep.subr.mxu0 0.0
  %184 = vmatpush1.msra.mxu0 0.0
  %185 = vmatprep.subr.mxu0 0.0
  %186 = vmatpush1.msra.mxu0 0.0
  %187 = vmatprep.subr.mxu0 0.0
  %188 = vmatpush1.msra.mxu0 0.0
  %189 = vmatprep.subr.mxu0 0.0
  %190 = vmatpush1.msra.mxu0 0.0
  %191 = vmatprep.subr.mxu0 0.0
  %192 = vmatpush1.msra.mxu0 0.0
  %193 = vmatprep.subr.mxu0 0.0
  %194 = vmatpush1.msra.mxu0 0.0
  %195 = vmatprep.subr.mxu0 0.0
  %v196 = vand.u32 %v84, 4294901760
  %v197 = vsub.f32 %v84, %v196
  %v198 = vand.u32 %v197, 4294901760
  %v199 = vsub.f32 %v197, %v198
  %v200 = vand.u32 %v199, 4294901760
  %201 = vmatpush1.msra.mxu0 %v200
  %202 = vmatprep.subr.mxu0 0.0
  %v203 = vand.u32 %v83, 4294901760
  %v204 = vsub.f32 %v83, %v203
  %v205 = vand.u32 %v204, 4294901760
  %v206 = vsub.f32 %v204, %v205
  %v207 = vand.u32 %v206, 4294901760
  %208 = vmatpush1.msra.mxu0 %v207
  %209 = vmatprep.subr.mxu0 0.0
  %v210 = vand.u32 %v82, 4294901760
  %v211 = vsub.f32 %v82, %v210
  %v212 = vand.u32 %v211, 4294901760
  %v213 = vsub.f32 %v211, %v212
  %v214 = vand.u32 %v213, 4294901760
  %215 = vmatpush1.msra.mxu0 %v214
  %216 = vmatprep.subr.mxu0 0.0
  %v217 = vand.u32 %v81, 4294901760
  %v218 = vsub.f32 %v81, %v217
  %v219 = vand.u32 %v218, 4294901760
  %v220 = vsub.f32 %v218, %v219
  %v221 = vand.u32 %v220, 4294901760
  %222 = vmatpush1.msra.mxu0 %v221
  %223 = vmatprep.subr.mxu0 0.0
  %v224 = vand.u32 %v80, 4294901760
  %v225 = vsub.f32 %v80, %v224
  %v226 = vand.u32 %v225, 4294901760
  %v227 = vsub.f32 %v225, %v226
  %v228 = vand.u32 %v227, 4294901760
  %229 = vmatpush1.msra.mxu0 %v228
  %230 = vmatprep.subr.mxu0 0.0
  %v231 = vand.u32 %v79, 4294901760
  %v232 = vsub.f32 %v79, %v231
  %v233 = vand.u32 %v232, 4294901760
  %v234 = vsub.f32 %v232, %v233
  %v235 = vand.u32 %v234, 4294901760
  %236 = vmatpush1.msra.mxu0 %v235
  %237 = vmatprep.subr.mxu0 0.0
  %v238 = vand.u32 %v78, 4294901760
  %v239 = vsub.f32 %v78, %v238
  %v240 = vand.u32 %v239, 4294901760
  %v241 = vsub.f32 %v239, %v240
  %v242 = vand.u32 %v241, 4294901760
  %243 = vmatpush1.msra.mxu0 %v242
  %244 = vmatprep.subr.mxu0 0.0
  %v245 = vand.u32 %v77, 4294901760
  %v246 = vsub.f32 %v77, %v245
  %v247 = vand.u32 %v246, 4294901760
  %v248 = vsub.f32 %v246, %v247
  %v249 = vand.u32 %v248, 4294901760
  %250 = vmatpush1.msra.mxu0 %v249
  %251 = vmatprep.subr.mxu0 0.0
  %252 = vmatpush2.msra.mxu0 0.0
  %253 = vmatprep.subr.mxu0 0.0
  %254 = vmatpush2.msra.mxu0 0.0
  %255 = vmatprep.subr.mxu0 0.0
  %256 = vmatpush2.msra.mxu0 0.0
  %257 = vmatprep.subr.mxu0 0.0
  %258 = vmatpush2.msra.mxu0 0.0
  %259 = vmatprep.subr.mxu0 0.0
  %260 = vmatpush2.msra.mxu0 0.0
  %261 = vmatprep.subr.mxu0 0.0
  %262 = vmatpush2.msra.mxu0 0.0
  %263 = vmatprep.subr.mxu0 0.0
  %264 = vmatpush2.msra.mxu0 0.0
  %265 = vmatprep.subr.mxu0 0.0
  %266 = vmatpush2.msra.mxu0 0.0
  %267 = vmatprep.subr.mxu0 0.0
  %268 = vmatpush2.msra.mxu0 0.0
  %269 = vmatprep.subr.mxu0 0.0
  %270 = vmatpush2.msra.mxu0 0.0
  %271 = vmatprep.subr.mxu0 0.0
  %272 = vmatpush2.msra.mxu0 0.0
  %273 = vmatprep.subr.mxu0 0.0
  %274 = vmatpush2.msra.mxu0 0.0
  %275 = vmatprep.subr.mxu0 0.0
  %276 = vmatpush2.msra.mxu0 0.0
  %277 = vmatprep.subr.mxu0 0.0
  %278 = vmatpush2.msra.mxu0 0.0
  %279 = vmatprep.subr.mxu0 0.0
  %280 = vmatpush2.msra.mxu0 0.0
  %281 = vmatprep.subr.mxu0 0.0
  %282 = vmatpush2.msra.mxu0 0.0
  %283 = vmatprep.mubr.f32.mxu0 0.0
  %v284 = vand.u32 %v94, 4294901760
  %285 = vmatmul.mubr.f32.gmra.mxu0 %v284
  %v286 = vpop.f32.mrf.mxu0
  %v287 = vadd.f32 %v176, %v286
  %v288 = vpop.f32.mrf.mxu0
  %289 = vdwg.mxu0
  %290 = vmatprep.subr.mxu0 0.0
  %291 = vmatpush1.msra.mxu0 0.0
  %292 = vmatprep.subr.mxu0 0.0
  %293 = vmatpush1.msra.mxu0 0.0
  %294 = vmatprep.subr.mxu0 0.0
  %295 = vmatpush1.msra.mxu0 0.0
  %296 = vmatprep.subr.mxu0 0.0
  %297 = vmatpush1.msra.mxu0 0.0
  %298 = vmatprep.subr.mxu0 0.0
  %299 = vmatpush1.msra.mxu0 0.0
  %300 = vmatprep.subr.mxu0 0.0
  %301 = vmatpush1.msra.mxu0 0.0
  %302 = vmatprep.subr.mxu0 0.0
  %303 = vmatpush1.msra.mxu0 0.0
  %304 = vmatprep.subr.mxu0 0.0
  %305 = vmatpush1.msra.mxu0 0.0
  %306 = vmatprep.subr.mxu0 0.0
  %v307 = vand.u32 %v84, 4294901760
  %v308 = vsub.f32 %v84, %v307
  %309 = vmatpush1.msra.mxu0 %v308
  %310 = vmatprep.subr.mxu0 0.0
  %v311 = vand.u32 %v83, 4294901760
  %v312 = vsub.f32 %v83, %v311
  %313 = vmatpush1.msra.mxu0 %v312
  %314 = vmatprep.subr.mxu0 0.0
  %v315 = vand.u32 %v82, 4294901760
  %v316 = vsub.f32 %v82, %v315
  %317 = vmatpush1.msra.mxu0 %v316
  %318 = vmatprep.subr.mxu0 0.0
  %v319 = vand.u32 %v81, 4294901760
  %v320 = vsub.f32 %v81, %v319
  %321 = vmatpush1.msra.mxu0 %v320
  %322 = vmatprep.subr.mxu0 0.0
  %v323 = vand.u32 %v80, 4294901760
  %v324 = vsub.f32 %v80, %v323
  %325 = vmatpush1.msra.mxu0 %v324
  %326 = vmatprep.subr.mxu0 0.0
  %v327 = vand.u32 %v79, 4294901760
  %v328 = vsub.f32 %v79, %v327
  %329 = vmatpush1.msra.mxu0 %v328
  %330 = vmatprep.subr.mxu0 0.0
  %v331 = vand.u32 %v78, 4294901760
  %v332 = vsub.f32 %v78, %v331
  %333 = vmatpush1.msra.mxu0 %v332
  %334 = vmatprep.subr.mxu0 0.0
  %v335 = vand.u32 %v77, 4294901760
  %v336 = vsub.f32 %v77, %v335
  %337 = vmatpush1.msra.mxu0 %v336
  %338 = vmatprep.subr.mxu0 0.0
  %339 = vmatpush2.msra.mxu0 0.0
  %340 = vmatprep.subr.mxu0 0.0
  %341 = vmatpush2.msra.mxu0 0.0
  %342 = vmatprep.subr.mxu0 0.0
  %343 = vmatpush2.msra.mxu0 0.0
  %344 = vmatprep.subr.mxu0 0.0
  %345 = vmatpush2.msra.mxu0 0.0
  %346 = vmatprep.subr.mxu0 0.0
  %347 = vmatpush2.msra.mxu0 0.0
  %348 = vmatprep.subr.mxu0 0.0
  %349 = vmatpush2.msra.mxu0 0.0
  %350 = vmatprep.subr.mxu0 0.0
  %351 = vmatpush2.msra.mxu0 0.0
  %352 = vmatprep.subr.mxu0 0.0
  %353 = vmatpush2.msra.mxu0 0.0
  %354 = vmatprep.subr.mxu0 0.0
  %355 = vmatpush2.msra.mxu0 0.0
  %356 = vmatprep.subr.mxu0 0.0
  %357 = vmatpush2.msra.mxu0 0.0
  %358 = vmatprep.subr.mxu0 0.0
  %359 = vmatpush2.msra.mxu0 0.0
  %360 = vmatprep.subr.mxu0 0.0
  %361 = vmatpush2.msra.mxu0 0.0
  %362 = vmatprep.subr.mxu0 0.0
  %363 = vmatpush2.msra.mxu0 0.0
  %364 = vmatprep.subr.mxu0 0.0
  %365 = vmatpush2.msra.mxu0 0.0
  %366 = vmatprep.subr.mxu0 0.0
  %367 = vmatpush2.msra.mxu0 0.0
  %368 = vmatprep.subr.mxu0 0.0
  %369 = vmatpush2.msra.mxu0 0.0
  %370 = vmatprep.mubr.f32.mxu0 0.0
  %v371 = vand.u32 %v94, 4294901760
  %v372 = vsub.f32 %v94, %v371
  %373 = vmatmul.mubr.f32.gmra.mxu0 %v372
  %v374 = vpop.f32.mrf.mxu0
  %v375 = vadd.f32 %v287, %v374
  %v376 = vpop.f32.mrf.mxu0
  %377 = vdwg.mxu0
  %378 = vmatprep.subr.mxu0 0.0
  %379 = vmatpush1.msra.mxu0 0.0
  %380 = vmatprep.subr.mxu0 0.0
  %381 = vmatpush1.msra.mxu0 0.0
  %382 = vmatprep.subr.mxu0 0.0
  %383 = vmatpush1.msra.mxu0 0.0
  %384 = vmatprep.subr.mxu0 0.0
  %385 = vmatpush1.msra.mxu0 0.0
  %386 = vmatprep.subr.mxu0 0.0
  %387 = vmatpush1.msra.mxu0 0.0
  %388 = vmatprep.subr.mxu0 0.0
  %389 = vmatpush1.msra.mxu0 0.0
  %390 = vmatprep.subr.mxu0 0.0
  %391 = vmatpush1.msra.mxu0 0.0
  %392 = vmatprep.subr.mxu0 0.0
  %393 = vmatpush1.msra.mxu0 0.0
  %394 = vmatprep.subr.mxu0 0.0
  %v395 = vand.u32 %v84, 4294901760
  %396 = vmatpush1.msra.mxu0 %v395
  %397 = vmatprep.subr.mxu0 0.0
  %v398 = vand.u32 %v83, 4294901760
  %399 = vmatpush1.msra.mxu0 %v398
  %400 = vmatprep.subr.mxu0 0.0
  %v401 = vand.u32 %v82, 4294901760
  %402 = vmatpush1.msra.mxu0 %v401
  %403 = vmatprep.subr.mxu0 0.0
  %v404 = vand.u32 %v81, 4294901760
  %405 = vmatpush1.msra.mxu0 %v404
  %406 = vmatprep.subr.mxu0 0.0
  %v407 = vand.u32 %v80, 4294901760
  %408 = vmatpush1.msra.mxu0 %v407
  %409 = vmatprep.subr.mxu0 0.0
  %v410 = vand.u32 %v79, 4294901760
  %411 = vmatpush1.msra.mxu0 %v410
  %412 = vmatprep.subr.mxu0 0.0
  %v413 = vand.u32 %v78, 4294901760
  %414 = vmatpush1.msra.mxu0 %v413
  %415 = vmatprep.subr.mxu0 0.0
  %v416 = vand.u32 %v77, 4294901760
  %417 = vmatpush1.msra.mxu0 %v416
  %418 = vmatprep.subr.mxu0 0.0
  %419 = vmatpush2.msra.mxu0 0.0
  %420 = vmatprep.subr.mxu0 0.0
  %421 = vmatpush2.msra.mxu0 0.0
  %422 = vmatprep.subr.mxu0 0.0
  %423 = vmatpush2.msra.mxu0 0.0
  %424 = vmatprep.subr.mxu0 0.0
  %425 = vmatpush2.msra.mxu0 0.0
  %426 = vmatprep.subr.mxu0 0.0
  %427 = vmatpush2.msra.mxu0 0.0
  %428 = vmatprep.subr.mxu0 0.0
  %429 = vmatpush2.msra.mxu0 0.0
  %430 = vmatprep.subr.mxu0 0.0
  %431 = vmatpush2.msra.mxu0 0.0
  %432 = vmatprep.subr.mxu0 0.0
  %433 = vmatpush2.msra.mxu0 0.0
  %434 = vmatprep.subr.mxu0 0.0
  %435 = vmatpush2.msra.mxu0 0.0
  %436 = vmatprep.subr.mxu0 0.0
  %437 = vmatpush2.msra.mxu0 0.0
  %438 = vmatprep.subr.mxu0 0.0
  %439 = vmatpush2.msra.mxu0 0.0
  %440 = vmatprep.subr.mxu0 0.0
  %441 = vmatpush2.msra.mxu0 0.0
  %442 = vmatprep.subr.mxu0 0.0
  %443 = vmatpush2.msra.mxu0 0.0
  %444 = vmatprep.subr.mxu0 0.0
  %445 = vmatpush2.msra.mxu0 0.0
  %446 = vmatprep.subr.mxu0 0.0
  %447 = vmatpush2.msra.mxu0 0.0
  %448 = vmatprep.subr.mxu0 0.0
  %449 = vmatpush2.msra.mxu0 0.0
  %450 = vmatprep.mubr.f32.mxu0 0.0
  %v451 = vand.u32 %v94, 4294901760
  %v452 = vsub.f32 %v94, %v451
  %v453 = vand.u32 %v452, 4294901760
  %454 = vmatmul.mubr.f32.gmra.mxu0 %v453
  %v455 = vpop.f32.mrf.mxu0
  %v456 = vadd.f32 %v375, %v455
  %v457 = vpop.f32.mrf.mxu0
  %458 = vdwg.mxu0
  %459 = vmatprep.subr.mxu0 0.0
  %460 = vmatpush1.msra.mxu0 0.0
  %461 = vmatprep.subr.mxu0 0.0
  %462 = vmatpush1.msra.mxu0 0.0
  %463 = vmatprep.subr.mxu0 0.0
  %464 = vmatpush1.msra.mxu0 0.0
  %465 = vmatprep.subr.mxu0 0.0
  %466 = vmatpush1.msra.mxu0 0.0
  %467 = vmatprep.subr.mxu0 0.0
  %468 = vmatpush1.msra.mxu0 0.0
  %469 = vmatprep.subr.mxu0 0.0
  %470 = vmatpush1.msra.mxu0 0.0
  %471 = vmatprep.subr.mxu0 0.0
  %472 = vmatpush1.msra.mxu0 0.0
  %473 = vmatprep.subr.mxu0 0.0
  %474 = vmatpush1.msra.mxu0 0.0
  %475 = vmatprep.subr.mxu0 0.0
  %v476 = vand.u32 %v84, 4294901760
  %v477 = vsub.f32 %v84, %v476
  %v478 = vand.u32 %v477, 4294901760
  %479 = vmatpush1.msra.mxu0 %v478
  %480 = vmatprep.subr.mxu0 0.0
  %v481 = vand.u32 %v83, 4294901760
  %v482 = vsub.f32 %v83, %v481
  %v483 = vand.u32 %v482, 4294901760
  %484 = vmatpush1.msra.mxu0 %v483
  %485 = vmatprep.subr.mxu0 0.0
  %v486 = vand.u32 %v82, 4294901760
  %v487 = vsub.f32 %v82, %v486
  %v488 = vand.u32 %v487, 4294901760
  %489 = vmatpush1.msra.mxu0 %v488
  %490 = vmatprep.subr.mxu0 0.0
  %v491 = vand.u32 %v81, 4294901760
  %v492 = vsub.f32 %v81, %v491
  %v493 = vand.u32 %v492, 4294901760
  %494 = vmatpush1.msra.mxu0 %v493
  %495 = vmatprep.subr.mxu0 0.0
  %v496 = vand.u32 %v80, 4294901760
  %v497 = vsub.f32 %v80, %v496
  %v498 = vand.u32 %v497, 4294901760
  %499 = vmatpush1.msra.mxu0 %v498
  %500 = vmatprep.subr.mxu0 0.0
  %v501 = vand.u32 %v79, 4294901760
  %v502 = vsub.f32 %v79, %v501
  %v503 = vand.u32 %v502, 4294901760
  %504 = vmatpush1.msra.mxu0 %v503
  %505 = vmatprep.subr.mxu0 0.0
  %v506 = vand.u32 %v78, 4294901760
  %v507 = vsub.f32 %v78, %v506
  %v508 = vand.u32 %v507, 4294901760
  %509 = vmatpush1.msra.mxu0 %v508
  %510 = vmatprep.subr.mxu0 0.0
  %v511 = vand.u32 %v77, 4294901760
  %v512 = vsub.f32 %v77, %v511
  %v513 = vand.u32 %v512, 4294901760
  %514 = vmatpush1.msra.mxu0 %v513
  %515 = vmatprep.subr.mxu0 0.0
  %516 = vmatpush2.msra.mxu0 0.0
  %517 = vmatprep.subr.mxu0 0.0
  %518 = vmatpush2.msra.mxu0 0.0
  %519 = vmatprep.subr.mxu0 0.0
  %520 = vmatpush2.msra.mxu0 0.0
  %521 = vmatprep.subr.mxu0 0.0
  %522 = vmatpush2.msra.mxu0 0.0
  %523 = vmatprep.subr.mxu0 0.0
  %524 = vmatpush2.msra.mxu0 0.0
  %525 = vmatprep.subr.mxu0 0.0
  %526 = vmatpush2.msra.mxu0 0.0
  %527 = vmatprep.subr.mxu0 0.0
  %528 = vmatpush2.msra.mxu0 0.0
  %529 = vmatprep.subr.mxu0 0.0
  %530 = vmatpush2.msra.mxu0 0.0
  %531 = vmatprep.subr.mxu0 0.0
  %532 = vmatpush2.msra.mxu0 0.0
  %533 = vmatprep.subr.mxu0 0.0
  %534 = vmatpush2.msra.mxu0 0.0
  %535 = vmatprep.subr.mxu0 0.0
  %536 = vmatpush2.msra.mxu0 0.0
  %537 = vmatprep.subr.mxu0 0.0
  %538 = vmatpush2.msra.mxu0 0.0
  %539 = vmatprep.subr.mxu0 0.0
  %540 = vmatpush2.msra.mxu0 0.0
  %541 = vmatprep.subr.mxu0 0.0
  %542 = vmatpush2.msra.mxu0 0.0
  %543 = vmatprep.subr.mxu0 0.0
  %544 = vmatpush2.msra.mxu0 0.0
  %545 = vmatprep.subr.mxu0 0.0
  %546 = vmatpush2.msra.mxu0 0.0
  %547 = vmatprep.mubr.f32.mxu0 0.0
  %v548 = vand.u32 %v94, 4294901760
  %549 = vmatmul.mubr.f32.gmra.mxu0 %v548
  %v550 = vpop.f32.mrf.mxu0
  %v551 = vadd.f32 %v456, %v550
  %v552 = vpop.f32.mrf.mxu0
  %553 = vdwg.mxu0
  %554 = vmatprep.subr.mxu0 0.0
  %555 = vmatpush1.msra.mxu0 0.0
  %556 = vmatprep.subr.mxu0 0.0
  %557 = vmatpush1.msra.mxu0 0.0
  %558 = vmatprep.subr.mxu0 0.0
  %559 = vmatpush1.msra.mxu0 0.0
  %560 = vmatprep.subr.mxu0 0.0
  %561 = vmatpush1.msra.mxu0 0.0
  %562 = vmatprep.subr.mxu0 0.0
  %563 = vmatpush1.msra.mxu0 0.0
  %564 = vmatprep.subr.mxu0 0.0
  %565 = vmatpush1.msra.mxu0 0.0
  %566 = vmatprep.subr.mxu0 0.0
  %567 = vmatpush1.msra.mxu0 0.0
  %568 = vmatprep.subr.mxu0 0.0
  %569 = vmatpush1.msra.mxu0 0.0
  %570 = vmatprep.subr.mxu0 0.0
  %v571 = vand.u32 %v84, 4294901760
  %572 = vmatpush1.msra.mxu0 %v571
  %573 = vmatprep.subr.mxu0 0.0
  %v574 = vand.u32 %v83, 4294901760
  %575 = vmatpush1.msra.mxu0 %v574
  %576 = vmatprep.subr.mxu0 0.0
  %v577 = vand.u32 %v82, 4294901760
  %578 = vmatpush1.msra.mxu0 %v577
  %579 = vmatprep.subr.mxu0 0.0
  %v580 = vand.u32 %v81, 4294901760
  %581 = vmatpush1.msra.mxu0 %v580
  %582 = vmatprep.subr.mxu0 0.0
  %v583 = vand.u32 %v80, 4294901760
  %584 = vmatpush1.msra.mxu0 %v583
  %585 = vmatprep.subr.mxu0 0.0
  %v586 = vand.u32 %v79, 4294901760
  %587 = vmatpush1.msra.mxu0 %v586
  %588 = vmatprep.subr.mxu0 0.0
  %v589 = vand.u32 %v78, 4294901760
  %590 = vmatpush1.msra.mxu0 %v589
  %591 = vmatprep.subr.mxu0 0.0
  %v592 = vand.u32 %v77, 4294901760
  %593 = vmatpush1.msra.mxu0 %v592
  %594 = vmatprep.subr.mxu0 0.0
  %595 = vmatpush2.msra.mxu0 0.0
  %596 = vmatprep.subr.mxu0 0.0
  %597 = vmatpush2.msra.mxu0 0.0
  %598 = vmatprep.subr.mxu0 0.0
  %599 = vmatpush2.msra.mxu0 0.0
  %600 = vmatprep.subr.mxu0 0.0
  %601 = vmatpush2.msra.mxu0 0.0
  %602 = vmatprep.subr.mxu0 0.0
  %603 = vmatpush2.msra.mxu0 0.0
  %604 = vmatprep.subr.mxu0 0.0
  %605 = vmatpush2.msra.mxu0 0.0
  %606 = vmatprep.subr.mxu0 0.0
  %607 = vmatpush2.msra.mxu0 0.0
  %608 = vmatprep.subr.mxu0 0.0
  %609 = vmatpush2.msra.mxu0 0.0
  %610 = vmatprep.subr.mxu0 0.0
  %611 = vmatpush2.msra.mxu0 0.0
  %612 = vmatprep.subr.mxu0 0.0
  %613 = vmatpush2.msra.mxu0 0.0
  %614 = vmatprep.subr.mxu0 0.0
  %615 = vmatpush2.msra.mxu0 0.0
  %616 = vmatprep.subr.mxu0 0.0
  %617 = vmatpush2.msra.mxu0 0.0
  %618 = vmatprep.subr.mxu0 0.0
  %619 = vmatpush2.msra.mxu0 0.0
  %620 = vmatprep.subr.mxu0 0.0
  %621 = vmatpush2.msra.mxu0 0.0
  %622 = vmatprep.subr.mxu0 0.0
  %623 = vmatpush2.msra.mxu0 0.0
  %624 = vmatprep.subr.mxu0 0.0
  %625 = vmatpush2.msra.mxu0 0.0
  %626 = vmatprep.mubr.f32.mxu0 0.0
  %v627 = vand.u32 %v94, 4294901760
  %628 = vmatmul.mubr.f32.gmra.mxu0 %v627
  %v629 = vpop.f32.mrf.mxu0
  %v630 = vadd.f32 %v551, %v629
  %v631 = vpop.f32.mrf.mxu0
  %632 = vdwg.mxu0
  %v633 = vmax.f32 %v630, 0.0
  %v634 = vld [vmem:[%s5] sm:$0xff]
  %v635 = vld [vmem:[%s5 + $0x8] sm:$0xff]
  %v636 = vld [vmem:[%s5 + $0x10] sm:$0xff]
  %v637 = vld [vmem:[%s5 + $0x18] sm:$0xff]
  %v638 = vld [vmem:[%s5 + $0x20] sm:$0xff]
  %v639 = vld [vmem:[%s5 + $0x28] sm:$0xff]
  %v640 = vld [vmem:[%s5 + $0x30] sm:$0xff]
  %v641 = vld [vmem:[%s5 + $0x38] sm:$0xff]
  %v642 = vld [vmem:[%s6] sm:$0x1]
  %v644 = vlaneseq
  %v645 = vshrl.u32 %v644, 7
  %v646 = vsub.s32 0, %v645
  %v647 = vrot.slane %v642, %v646
  %v650 = vsel %vm92, %v633, 0
  %652 = vmatprep.subr.mxu0 0.0
  %653 = vmatpush1.msra.mxu0 0.0
  %654 = vmatprep.subr.mxu0 0.0
  %655 = vmatpush1.msra.mxu0 0.0
  %656 = vmatprep.subr.mxu0 0.0
  %657 = vmatpush1.msra.mxu0 0.0
  %658 = vmatprep.subr.mxu0 0.0
  %659 = vmatpush1.msra.mxu0 0.0
  %660 = vmatprep.subr.mxu0 0.0
  %661 = vmatpush1.msra.mxu0 0.0
  %662 = vmatprep.subr.mxu0 0.0
  %663 = vmatpush1.msra.mxu0 0.0
  %664 = vmatprep.subr.mxu0 0.0
  %665 = vmatpush1.msra.mxu0 0.0
  %666 = vmatprep.subr.mxu0 0.0
  %667 = vmatpush1.msra.mxu0 0.0
  %668 = vmatprep.subr.mxu0 0.0
  %v669 = vand.u32 %v641, 4294901760
  %670 = vmatpush1.msra.mxu0 %v669
  %671 = vmatprep.subr.mxu0 0.0
  %v672 = vand.u32 %v640, 4294901760
  %673 = vmatpush1.msra.mxu0 %v672
  %674 = vmatprep.subr.mxu0 0.0
  %v675 = vand.u32 %v639, 4294901760
  %676 = vmatpush1.msra.mxu0 %v675
  %677 = vmatprep.subr.mxu0 0.0
  %v678 = vand.u32 %v638, 4294901760
  %679 = vmatpush1.msra.mxu0 %v678
  %680 = vmatprep.subr.mxu0 0.0
  %v681 = vand.u32 %v637, 4294901760
  %682 = vmatpush1.msra.mxu0 %v681
  %683 = vmatprep.subr.mxu0 0.0
  %v684 = vand.u32 %v636, 4294901760
  %685 = vmatpush1.msra.mxu0 %v684
  %686 = vmatprep.subr.mxu0 0.0
  %v687 = vand.u32 %v635, 4294901760
  %688 = vmatpush1.msra.mxu0 %v687
  %689 = vmatprep.subr.mxu0 0.0
  %v690 = vand.u32 %v634, 4294901760
  %691 = vmatpush1.msra.mxu0 %v690
  %692 = vmatprep.subr.mxu0 0.0
  %693 = vmatpush2.msra.mxu0 0.0
  %694 = vmatprep.subr.mxu0 0.0
  %695 = vmatpush2.msra.mxu0 0.0
  %696 = vmatprep.subr.mxu0 0.0
  %697 = vmatpush2.msra.mxu0 0.0
  %698 = vmatprep.subr.mxu0 0.0
  %699 = vmatpush2.msra.mxu0 0.0
  %700 = vmatprep.subr.mxu0 0.0
  %701 = vmatpush2.msra.mxu0 0.0
  %702 = vmatprep.subr.mxu0 0.0
  %703 = vmatpush2.msra.mxu0 0.0
  %704 = vmatprep.subr.mxu0 0.0
  %705 = vmatpush2.msra.mxu0 0.0
  %706 = vmatprep.subr.mxu0 0.0
  %707 = vmatpush2.msra.mxu0 0.0
  %708 = vmatprep.subr.mxu0 0.0
  %709 = vmatpush2.msra.mxu0 0.0
  %710 = vmatprep.subr.mxu0 0.0
  %711 = vmatpush2.msra.mxu0 0.0
  %712 = vmatprep.subr.mxu0 0.0
  %713 = vmatpush2.msra.mxu0 0.0
  %714 = vmatprep.subr.mxu0 0.0
  %715 = vmatpush2.msra.mxu0 0.0
  %716 = vmatprep.subr.mxu0 0.0
  %717 = vmatpush2.msra.mxu0 0.0
  %718 = vmatprep.subr.mxu0 0.0
  %719 = vmatpush2.msra.mxu0 0.0
  %720 = vmatprep.subr.mxu0 0.0
  %721 = vmatpush2.msra.mxu0 0.0
  %722 = vmatprep.subr.mxu0 0.0
  %723 = vmatpush2.msra.mxu0 0.0
  %724 = vmatprep.mubr.f32.mxu0 0.0
  %v725 = vand.u32 %v650, 4294901760
  %v726 = vsub.f32 %v650, %v725
  %v727 = vand.u32 %v726, 4294901760
  %v728 = vsub.f32 %v726, %v727
  %v729 = vand.u32 %v728, 4294901760
  %730 = vmatmul.mubr.f32.gmra.mxu0 %v729
  %v731 = vpop.f32.mrf.mxu0
  %v732 = vadd.f32 %v647, %v731
  %v733 = vpop.f32.mrf.mxu0
  %734 = vdwg.mxu0
  %735 = vmatprep.subr.mxu0 0.0
  %736 = vmatpush1.msra.mxu0 0.0
  %737 = vmatprep.subr.mxu0 0.0
  %738 = vmatpush1.msra.mxu0 0.0
  %739 = vmatprep.subr.mxu0 0.0
  %740 = vmatpush1.msra.mxu0 0.0
  %741 = vmatprep.subr.mxu0 0.0
  %742 = vmatpush1.msra.mxu0 0.0
  %743 = vmatprep.subr.mxu0 0.0
  %744 = vmatpush1.msra.mxu0 0.0
  %745 = vmatprep.subr.mxu0 0.0
  %746 = vmatpush1.msra.mxu0 0.0
  %747 = vmatprep.subr.mxu0 0.0
  %748 = vmatpush1.msra.mxu0 0.0
  %749 = vmatprep.subr.mxu0 0.0
  %750 = vmatpush1.msra.mxu0 0.0
  %751 = vmatprep.subr.mxu0 0.0
  %v752 = vand.u32 %v641, 4294901760
  %v753 = vsub.f32 %v641, %v752
  %v754 = vand.u32 %v753, 4294901760
  %v755 = vsub.f32 %v753, %v754
  %v756 = vand.u32 %v755, 4294901760
  %757 = vmatpush1.msra.mxu0 %v756
  %758 = vmatprep.subr.mxu0 0.0
  %v759 = vand.u32 %v640, 4294901760
  %v760 = vsub.f32 %v640, %v759
  %v761 = vand.u32 %v760, 4294901760
  %v762 = vsub.f32 %v760, %v761
  %v763 = vand.u32 %v762, 4294901760
  %764 = vmatpush1.msra.mxu0 %v763
  %765 = vmatprep.subr.mxu0 0.0
  %v766 = vand.u32 %v639, 4294901760
  %v767 = vsub.f32 %v639, %v766
  %v768 = vand.u32 %v767, 4294901760
  %v769 = vsub.f32 %v767, %v768
  %v770 = vand.u32 %v769, 4294901760
  %771 = vmatpush1.msra.mxu0 %v770
  %772 = vmatprep.subr.mxu0 0.0
  %v773 = vand.u32 %v638, 4294901760
  %v774 = vsub.f32 %v638, %v773
  %v775 = vand.u32 %v774, 4294901760
  %v776 = vsub.f32 %v774, %v775
  %v777 = vand.u32 %v776, 4294901760
  %778 = vmatpush1.msra.mxu0 %v777
  %779 = vmatprep.subr.mxu0 0.0
  %v780 = vand.u32 %v637, 4294901760
  %v781 = vsub.f32 %v637, %v780
  %v782 = vand.u32 %v781, 4294901760
  %v783 = vsub.f32 %v781, %v782
  %v784 = vand.u32 %v783, 4294901760
  %785 = vmatpush1.msra.mxu0 %v784
  %786 = vmatprep.subr.mxu0 0.0
  %v787 = vand.u32 %v636, 4294901760
  %v788 = vsub.f32 %v636, %v787
  %v789 = vand.u32 %v788, 4294901760
  %v790 = vsub.f32 %v788, %v789
  %v791 = vand.u32 %v790, 4294901760
  %792 = vmatpush1.msra.mxu0 %v791
  %793 = vmatprep.subr.mxu0 0.0
  %v794 = vand.u32 %v635, 4294901760
  %v795 = vsub.f32 %v635, %v794
  %v796 = vand.u32 %v795, 4294901760
  %v797 = vsub.f32 %v795, %v796
  %v798 = vand.u32 %v797, 4294901760
  %799 = vmatpush1.msra.mxu0 %v798
  %800 = vmatprep.subr.mxu0 0.0
  %v801 = vand.u32 %v634, 4294901760
  %v802 = vsub.f32 %v634, %v801
  %v803 = vand.u32 %v802, 4294901760
  %v804 = vsub.f32 %v802, %v803
  %v805 = vand.u32 %v804, 4294901760
  %806 = vmatpush1.msra.mxu0 %v805
  %807 = vmatprep.subr.mxu0 0.0
  %808 = vmatpush2.msra.mxu0 0.0
  %809 = vmatprep.subr.mxu0 0.0
  %810 = vmatpush2.msra.mxu0 0.0
  %811 = vmatprep.subr.mxu0 0.0
  %812 = vmatpush2.msra.mxu0 0.0
  %813 = vmatprep.subr.mxu0 0.0
  %814 = vmatpush2.msra.mxu0 0.0
  %815 = vmatprep.subr.mxu0 0.0
  %816 = vmatpush2.msra.mxu0 0.0
  %817 = vmatprep.subr.mxu0 0.0
  %818 = vmatpush2.msra.mxu0 0.0
  %819 = vmatprep.subr.mxu0 0.0
  %820 = vmatpush2.msra.mxu0 0.0
  %821 = vmatprep.subr.mxu0 0.0
  %822 = vmatpush2.msra.mxu0 0.0
  %823 = vmatprep.subr.mxu0 0.0
  %824 = vmatpush2.msra.mxu0 0.0
  %825 = vmatprep.subr.mxu0 0.0
  %826 = vmatpush2.msra.mxu0 0.0
  %827 = vmatprep.subr.mxu0 0.0
  %828 = vmatpush2.msra.mxu0 0.0
  %829 = vmatprep.subr.mxu0 0.0
  %830 = vmatpush2.msra.mxu0 0.0
  %831 = vmatprep.subr.mxu0 0.0
  %832 = vmatpush2.msra.mxu0 0.0
  %833 = vmatprep.subr.mxu0 0.0
  %834 = vmatpush2.msra.mxu0 0.0
  %835 = vmatprep.subr.mxu0 0.0
  %836 = vmatpush2.msra.mxu0 0.0
  %837 = vmatprep.subr.mxu0 0.0
  %838 = vmatpush2.msra.mxu0 0.0
  %839 = vmatprep.mubr.f32.mxu0 0.0
  %v840 = vand.u32 %v650, 4294901760
  %841 = vmatmul.mubr.f32.gmra.mxu0 %v840
  %v842 = vpop.f32.mrf.mxu0
  %v843 = vadd.f32 %v732, %v842
  %v844 = vpop.f32.mrf.mxu0
  %845 = vdwg.mxu0
  %846 = vmatprep.subr.mxu0 0.0
  %847 = vmatpush1.msra.mxu0 0.0
  %848 = vmatprep.subr.mxu0 0.0
  %849 = vmatpush1.msra.mxu0 0.0
  %850 = vmatprep.subr.mxu0 0.0
  %851 = vmatpush1.msra.mxu0 0.0
  %852 = vmatprep.subr.mxu0 0.0
  %853 = vmatpush1.msra.mxu0 0.0
  %854 = vmatprep.subr.mxu0 0.0
  %855 = vmatpush1.msra.mxu0 0.0
  %856 = vmatprep.subr.mxu0 0.0
  %857 = vmatpush1.msra.mxu0 0.0
  %858 = vmatprep.subr.mxu0 0.0
  %859 = vmatpush1.msra.mxu0 0.0
  %860 = vmatprep.subr.mxu0 0.0
  %861 = vmatpush1.msra.mxu0 0.0
  %862 = vmatprep.subr.mxu0 0.0
  %v863 = vand.u32 %v641, 4294901760
  %v864 = vsub.f32 %v641, %v863
  %865 = vmatpush1.msra.mxu0 %v864
  %866 = vmatprep.subr.mxu0 0.0
  %v867 = vand.u32 %v640, 4294901760
  %v868 = vsub.f32 %v640, %v867
  %869 = vmatpush1.msra.mxu0 %v868
  %870 = vmatprep.subr.mxu0 0.0
  %v871 = vand.u32 %v639, 4294901760
  %v872 = vsub.f32 %v639, %v871
  %873 = vmatpush1.msra.mxu0 %v872
  %874 = vmatprep.subr.mxu0 0.0
  %v875 = vand.u32 %v638, 4294901760
  %v876 = vsub.f32 %v638, %v875
  %877 = vmatpush1.msra.mxu0 %v876
  %878 = vmatprep.subr.mxu0 0.0
  %v879 = vand.u32 %v637, 4294901760
  %v880 = vsub.f32 %v637, %v879
  %881 = vmatpush1.msra.mxu0 %v880
  %882 = vmatprep.subr.mxu0 0.0
  %v883 = vand.u32 %v636, 4294901760
  %v884 = vsub.f32 %v636, %v883
  %885 = vmatpush1.msra.mxu0 %v884
  %886 = vmatprep.subr.mxu0 0.0
  %v887 = vand.u32 %v635, 4294901760
  %v888 = vsub.f32 %v635, %v887
  %889 = vmatpush1.msra.mxu0 %v888
  %890 = vmatprep.subr.mxu0 0.0
  %v891 = vand.u32 %v634, 4294901760
  %v892 = vsub.f32 %v634, %v891
  %893 = vmatpush1.msra.mxu0 %v892
  %894 = vmatprep.subr.mxu0 0.0
  %895 = vmatpush2.msra.mxu0 0.0
  %896 = vmatprep.subr.mxu0 0.0
  %897 = vmatpush2.msra.mxu0 0.0
  %898 = vmatprep.subr.mxu0 0.0
  %899 = vmatpush2.msra.mxu0 0.0
  %900 = vmatprep.subr.mxu0 0.0
  %901 = vmatpush2.msra.mxu0 0.0
  %902 = vmatprep.subr.mxu0 0.0
  %903 = vmatpush2.msra.mxu0 0.0
  %904 = vmatprep.subr.mxu0 0.0
  %905 = vmatpush2.msra.mxu0 0.0
  %906 = vmatprep.subr.mxu0 0.0
  %907 = vmatpush2.msra.mxu0 0.0
  %908 = vmatprep.subr.mxu0 0.0
  %909 = vmatpush2.msra.mxu0 0.0
  %910 = vmatprep.subr.mxu0 0.0
  %911 = vmatpush2.msra.mxu0 0.0
  %912 = vmatprep.subr.mxu0 0.0
  %913 = vmatpush2.msra.mxu0 0.0
  %914 = vmatprep.subr.mxu0 0.0
  %915 = vmatpush2.msra.mxu0 0.0
  %916 = vmatprep.subr.mxu0 0.0
  %917 = vmatpush2.msra.mxu0 0.0
  %918 = vmatprep.subr.mxu0 0.0
  %919 = vmatpush2.msra.mxu0 0.0
  %920 = vmatprep.subr.mxu0 0.0
  %921 = vmatpush2.msra.mxu0 0.0
  %922 = vmatprep.subr.mxu0 0.0
  %923 = vmatpush2.msra.mxu0 0.0
  %924 = vmatprep.subr.mxu0 0.0
  %925 = vmatpush2.msra.mxu0 0.0
  %926 = vmatprep.mubr.f32.mxu0 0.0
  %v927 = vand.u32 %v650, 4294901760
  %v928 = vsub.f32 %v650, %v927
  %929 = vmatmul.mubr.f32.gmra.mxu0 %v928
  %v930 = vpop.f32.mrf.mxu0
  %v931 = vadd.f32 %v843, %v930
  %v932 = vpop.f32.mrf.mxu0
  %933 = vdwg.mxu0
  %934 = vmatprep.subr.mxu0 0.0
  %935 = vmatpush1.msra.mxu0 0.0
  %936 = vmatprep.subr.mxu0 0.0
  %937 = vmatpush1.msra.mxu0 0.0
  %938 = vmatprep.subr.mxu0 0.0
  %939 = vmatpush1.msra.mxu0 0.0
  %940 = vmatprep.subr.mxu0 0.0
  %941 = vmatpush1.msra.mxu0 0.0
  %942 = vmatprep.subr.mxu0 0.0
  %943 = vmatpush1.msra.mxu0 0.0
  %944 = vmatprep.subr.mxu0 0.0
  %945 = vmatpush1.msra.mxu0 0.0
  %946 = vmatprep.subr.mxu0 0.0
  %947 = vmatpush1.msra.mxu0 0.0
  %948 = vmatprep.subr.mxu0 0.0
  %949 = vmatpush1.msra.mxu0 0.0
  %950 = vmatprep.subr.mxu0 0.0
  %v951 = vand.u32 %v641, 4294901760
  %952 = vmatpush1.msra.mxu0 %v951
  %953 = vmatprep.subr.mxu0 0.0
  %v954 = vand.u32 %v640, 4294901760
  %955 = vmatpush1.msra.mxu0 %v954
  %956 = vmatprep.subr.mxu0 0.0
  %v957 = vand.u32 %v639, 4294901760
  %958 = vmatpush1.msra.mxu0 %v957
  %959 = vmatprep.subr.mxu0 0.0
  %v960 = vand.u32 %v638, 4294901760
  %961 = vmatpush1.msra.mxu0 %v960
  %962 = vmatprep.subr.mxu0 0.0
  %v963 = vand.u32 %v637, 4294901760
  %964 = vmatpush1.msra.mxu0 %v963
  %965 = vmatprep.subr.mxu0 0.0
  %v966 = vand.u32 %v636, 4294901760
  %967 = vmatpush1.msra.mxu0 %v966
  %968 = vmatprep.subr.mxu0 0.0
  %v969 = vand.u32 %v635, 4294901760
  %970 = vmatpush1.msra.mxu0 %v969
  %971 = vmatprep.subr.mxu0 0.0
  %v972 = vand.u32 %v634, 4294901760
  %973 = vmatpush1.msra.mxu0 %v972
  %974 = vmatprep.subr.mxu0 0.0
  %975 = vmatpush2.msra.mxu0 0.0
  %976 = vmatprep.subr.mxu0 0.0
  %977 = vmatpush2.msra.mxu0 0.0
  %978 = vmatprep.subr.mxu0 0.0
  %979 = vmatpush2.msra.mxu0 0.0
  %980 = vmatprep.subr.mxu0 0.0
  %981 = vmatpush2.msra.mxu0 0.0
  %982 = vmatprep.subr.mxu0 0.0
  %983 = vmatpush2.msra.mxu0 0.0
  %984 = vmatprep.subr.mxu0 0.0
  %985 = vmatpush2.msra.mxu0 0.0
  %986 = vmatprep.subr.mxu0 0.0
  %987 = vmatpush2.msra.mxu0 0.0
  %988 = vmatprep.subr.mxu0 0.0
  %989 = vmatpush2.msra.mxu0 0.0
  %990 = vmatprep.subr.mxu0 0.0
  %991 = vmatpush2.msra.mxu0 0.0
  %992 = vmatprep.subr.mxu0 0.0
  %993 = vmatpush2.msra.mxu0 0.0
  %994 = vmatprep.subr.mxu0 0.0
  %995 = vmatpush2.msra.mxu0 0.0
  %996 = vmatprep.subr.mxu0 0.0
  %997 = vmatpush2.msra.mxu0 0.0
  %998 = vmatprep.subr.mxu0 0.0
  %999 = vmatpush2.msra.mxu0 0.0
  %1000 = vmatprep.subr.mxu0 0.0
  %1001 = vmatpush2.msra.mxu0 0.0
  %1002 = vmatprep.subr.mxu0 0.0
  %1003 = vmatpush2.msra.mxu0 0.0
  %1004 = vmatprep.subr.mxu0 0.0
  %1005 = vmatpush2.msra.mxu0 0.0
  %1006 = vmatprep.mubr.f32.mxu0 0.0
  %v1007 = vand.u32 %v650, 4294901760
  %v1008 = vsub.f32 %v650, %v1007
  %v1009 = vand.u32 %v1008, 4294901760
  %1010 = vmatmul.mubr.f32.gmra.mxu0 %v1009
  %v1011 = vpop.f32.mrf.mxu0
  %v1012 = vadd.f32 %v931, %v1011
  %v1013 = vpop.f32.mrf.mxu0
  %1014 = vdwg.mxu0
  %1015 = vmatprep.subr.mxu0 0.0
  %1016 = vmatpush1.msra.mxu0 0.0
  %1017 = vmatprep.subr.mxu0 0.0
  %1018 = vmatpush1.msra.mxu0 0.0
  %1019 = vmatprep.subr.mxu0 0.0
  %1020 = vmatpush1.msra.mxu0 0.0
  %1021 = vmatprep.subr.mxu0 0.0
  %1022 = vmatpush1.msra.mxu0 0.0
  %1023 = vmatprep.subr.mxu0 0.0
  %1024 = vmatpush1.msra.mxu0 0.0
  %1025 = vmatprep.subr.mxu0 0.0
  %1026 = vmatpush1.msra.mxu0 0.0
  %1027 = vmatprep.subr.mxu0 0.0
  %1028 = vmatpush1.msra.mxu0 0.0
  %1029 = vmatprep.subr.mxu0 0.0
  %1030 = vmatpush1.msra.mxu0 0.0
  %1031 = vmatprep.subr.mxu0 0.0
  %v1032 = vand.u32 %v641, 4294901760
  %v1033 = vsub.f32 %v641, %v1032
  %v1034 = vand.u32 %v1033, 4294901760
  %1035 = vmatpush1.msra.mxu0 %v1034
  %1036 = vmatprep.subr.mxu0 0.0
  %v1037 = vand.u32 %v640, 4294901760
  %v1038 = vsub.f32 %v640, %v1037
  %v1039 = vand.u32 %v1038, 4294901760
  %1040 = vmatpush1.msra.mxu0 %v1039
  %1041 = vmatprep.subr.mxu0 0.0
  %v1042 = vand.u32 %v639, 4294901760
  %v1043 = vsub.f32 %v639, %v1042
  %v1044 = vand.u32 %v1043, 4294901760
  %1045 = vmatpush1.msra.mxu0 %v1044
  %1046 = vmatprep.subr.mxu0 0.0
  %v1047 = vand.u32 %v638, 4294901760
  %v1048 = vsub.f32 %v638, %v1047
  %v1049 = vand.u32 %v1048, 4294901760
  %1050 = vmatpush1.msra.mxu0 %v1049
  %1051 = vmatprep.subr.mxu0 0.0
  %v1052 = vand.u32 %v637, 4294901760
  %v1053 = vsub.f32 %v637, %v1052
  %v1054 = vand.u32 %v1053, 4294901760
  %1055 = vmatpush1.msra.mxu0 %v1054
  %1056 = vmatprep.subr.mxu0 0.0
  %v1057 = vand.u32 %v636, 4294901760
  %v1058 = vsub.f32 %v636, %v1057
  %v1059 = vand.u32 %v1058, 4294901760
  %1060 = vmatpush1.msra.mxu0 %v1059
  %1061 = vmatprep.subr.mxu0 0.0
  %v1062 = vand.u32 %v635, 4294901760
  %v1063 = vsub.f32 %v635, %v1062
  %v1064 = vand.u32 %v1063, 4294901760
  %1065 = vmatpush1.msra.mxu0 %v1064
  %1066 = vmatprep.subr.mxu0 0.0
  %v1067 = vand.u32 %v634, 4294901760
  %v1068 = vsub.f32 %v634, %v1067
  %v1069 = vand.u32 %v1068, 4294901760
  %1070 = vmatpush1.msra.mxu0 %v1069
  %1071 = vmatprep.subr.mxu0 0.0
  %1072 = vmatpush2.msra.mxu0 0.0
  %1073 = vmatprep.subr.mxu0 0.0
  %1074 = vmatpush2.msra.mxu0 0.0
  %1075 = vmatprep.subr.mxu0 0.0
  %1076 = vmatpush2.msra.mxu0 0.0
  %1077 = vmatprep.subr.mxu0 0.0
  %1078 = vmatpush2.msra.mxu0 0.0
  %1079 = vmatprep.subr.mxu0 0.0
  %1080 = vmatpush2.msra.mxu0 0.0
  %1081 = vmatprep.subr.mxu0 0.0
  %1082 = vmatpush2.msra.mxu0 0.0
  %1083 = vmatprep.subr.mxu0 0.0
  %1084 = vmatpush2.msra.mxu0 0.0
  %1085 = vmatprep.subr.mxu0 0.0
  %1086 = vmatpush2.msra.mxu0 0.0
  %1087 = vmatprep.subr.mxu0 0.0
  %1088 = vmatpush2.msra.mxu0 0.0
  %1089 = vmatprep.subr.mxu0 0.0
  %1090 = vmatpush2.msra.mxu0 0.0
  %1091 = vmatprep.subr.mxu0 0.0
  %1092 = vmatpush2.msra.mxu0 0.0
  %1093 = vmatprep.subr.mxu0 0.0
  %1094 = vmatpush2.msra.mxu0 0.0
  %1095 = vmatprep.subr.mxu0 0.0
  %1096 = vmatpush2.msra.mxu0 0.0
  %1097 = vmatprep.subr.mxu0 0.0
  %1098 = vmatpush2.msra.mxu0 0.0
  %1099 = vmatprep.subr.mxu0 0.0
  %1100 = vmatpush2.msra.mxu0 0.0
  %1101 = vmatprep.subr.mxu0 0.0
  %1102 = vmatpush2.msra.mxu0 0.0
  %1103 = vmatprep.mubr.f32.mxu0 0.0
  %v1104 = vand.u32 %v650, 4294901760
  %1105 = vmatmul.mubr.f32.gmra.mxu0 %v1104
  %v1106 = vpop.f32.mrf.mxu0
  %v1107 = vadd.f32 %v1012, %v1106
  %v1108 = vpop.f32.mrf.mxu0
  %1109 = vdwg.mxu0
  %1110 = vmatprep.subr.mxu0 0.0
  %1111 = vmatpush1.msra.mxu0 0.0
  %1112 = vmatprep.subr.mxu0 0.0
  %1113 = vmatpush1.msra.mxu0 0.0
  %1114 = vmatprep.subr.mxu0 0.0
  %1115 = vmatpush1.msra.mxu0 0.0
  %1116 = vmatprep.subr.mxu0 0.0
  %1117 = vmatpush1.msra.mxu0 0.0
  %1118 = vmatprep.subr.mxu0 0.0
  %1119 = vmatpush1.msra.mxu0 0.0
  %1120 = vmatprep.subr.mxu0 0.0
  %1121 = vmatpush1.msra.mxu0 0.0
  %1122 = vmatprep.subr.mxu0 0.0
  %1123 = vmatpush1.msra.mxu0 0.0
  %1124 = vmatprep.subr.mxu0 0.0
  %1125 = vmatpush1.msra.mxu0 0.0
  %1126 = vmatprep.subr.mxu0 0.0
  %v1127 = vand.u32 %v641, 4294901760
  %1128 = vmatpush1.msra.mxu0 %v1127
  %1129 = vmatprep.subr.mxu0 0.0
  %v1130 = vand.u32 %v640, 4294901760
  %1131 = vmatpush1.msra.mxu0 %v1130
  %1132 = vmatprep.subr.mxu0 0.0
  %v1133 = vand.u32 %v639, 4294901760
  %1134 = vmatpush1.msra.mxu0 %v1133
  %1135 = vmatprep.subr.mxu0 0.0
  %v1136 = vand.u32 %v638, 4294901760
  %1137 = vmatpush1.msra.mxu0 %v1136
  %1138 = vmatprep.subr.mxu0 0.0
  %v1139 = vand.u32 %v637, 4294901760
  %1140 = vmatpush1.msra.mxu0 %v1139
  %1141 = vmatprep.subr.mxu0 0.0
  %v1142 = vand.u32 %v636, 4294901760
  %1143 = vmatpush1.msra.mxu0 %v1142
  %1144 = vmatprep.subr.mxu0 0.0
  %v1145 = vand.u32 %v635, 4294901760
  %1146 = vmatpush1.msra.mxu0 %v1145
  %1147 = vmatprep.subr.mxu0 0.0
  %v1148 = vand.u32 %v634, 4294901760
  %1149 = vmatpush1.msra.mxu0 %v1148
  %1150 = vmatprep.subr.mxu0 0.0
  %1151 = vmatpush2.msra.mxu0 0.0
  %1152 = vmatprep.subr.mxu0 0.0
  %1153 = vmatpush2.msra.mxu0 0.0
  %1154 = vmatprep.subr.mxu0 0.0
  %1155 = vmatpush2.msra.mxu0 0.0
  %1156 = vmatprep.subr.mxu0 0.0
  %1157 = vmatpush2.msra.mxu0 0.0
  %1158 = vmatprep.subr.mxu0 0.0
  %1159 = vmatpush2.msra.mxu0 0.0
  %1160 = vmatprep.subr.mxu0 0.0
  %1161 = vmatpush2.msra.mxu0 0.0
  %1162 = vmatprep.subr.mxu0 0.0
  %1163 = vmatpush2.msra.mxu0 0.0
  %1164 = vmatprep.subr.mxu0 0.0
  %1165 = vmatpush2.msra.mxu0 0.0
  %1166 = vmatprep.subr.mxu0 0.0
  %1167 = vmatpush2.msra.mxu0 0.0
  %1168 = vmatprep.subr.mxu0 0.0
  %1169 = vmatpush2.msra.mxu0 0.0
  %1170 = vmatprep.subr.mxu0 0.0
  %1171 = vmatpush2.msra.mxu0 0.0
  %1172 = vmatprep.subr.mxu0 0.0
  %1173 = vmatpush2.msra.mxu0 0.0
  %1174 = vmatprep.subr.mxu0 0.0
  %1175 = vmatpush2.msra.mxu0 0.0
  %1176 = vmatprep.subr.mxu0 0.0
  %1177 = vmatpush2.msra.mxu0 0.0
  %1178 = vmatprep.subr.mxu0 0.0
  %1179 = vmatpush2.msra.mxu0 0.0
  %1180 = vmatprep.subr.mxu0 0.0
  %1181 = vmatpush2.msra.mxu0 0.0
  %1182 = vmatprep.mubr.f32.mxu0 0.0
  %v1183 = vand.u32 %v650, 4294901760
  %1184 = vmatmul.mubr.f32.gmra.mxu0 %v1183
  %v1185 = vpop.f32.mrf.mxu0
  %v1186 = vadd.f32 %v1107, %v1185
  %v1187 = vpop.f32.mrf.mxu0
  %1188 = vdwg.mxu0
  %vm1189 = vcmask 15360
  %1190 = vst.msk [vmem:[%s7] sm:$0xff] %vm1189, %v1186
  // Predicated region
  $region30: #{bc_policy_forward.1} parent=0 // pred_check
    _
  $region31: #{bc_policy_forward.1} parent=0 // pred_check_branch
    %1192 = sbr.rel (0) target = $region33
  $region32: #{bc_policy_forward.1} parent=0 // pred_region
    _
  $region33: #{bc_policy_forward.1} parent=0 // pred_fallthru
    _
  // Predicated region
  $region34: #{bc_policy_forward.1} parent=0 // pred_check
    _
  $region35: #{bc_policy_forward.1} parent=0 // pred_check_branch
    %1194 = sbr.rel (0) target = $region37
  $region36: #{bc_policy_forward.1} parent=0 // pred_region
    _
  $region37: #{bc_policy_forward.1} parent=0 // pred_fallthru
    _

</llo_original>
